<compile_context>
chip_gen: v7x
topology: tpu7x:2x2x1
jax: 0.10.0
libtpu: 0.0.40
codegen_flags: <defaults>
</compile_context>

<pallas_src>
import functools
import numpy as np
import jax
import jax.numpy as jnp
from jax.experimental import pallas as pl
from jax.experimental.pallas import tpu as pltpu

# ------------------------- model dimensions (small test) ---------------------
NUM_MODES = 6            # fixed by the module (6 gating estimators)
T, S = 10, 5             # orig 50, 5      -> feature_encoder input = T*S
D_EMB = 64               # orig 512
D_BEV = 32               # orig 128
D_MAP = 32               # orig 128
D_TOT = D_EMB + D_BEV + D_MAP
MAP_L, MAP_D = 8, 32     # orig 49, 256    -> map_encoder input = MAP_L*MAP_D
BEV_CIN, BEV_COUT, BEV_H, BEV_W = 32, 16, 8, 16   # orig 256, 128, 48, 176

# Gather bucketing for the aggregation kernel (fixed so kernel shapes never
# change between calls / no retracing even though grouping is data dependent).
SEG_MAX = 4              # max (cav, object) segments contributing to one ego object
M_PAD = 8                # NUM_MODES rows per segment, padded to a sublane-aligned 8
P_MAX = SEG_MAX * M_PAD  # gathered agent-embedding rows per ego object


def _round_up(x, m):
    return ((x + m - 1) // m) * m


# ------------------------------ generic MLP kernels ---------------------------
def _mlp3_kernel(x_ref, w0_ref, b0_ref, w1_ref, b1_ref, w2_ref, b2_ref, o_ref):
    # bf16 operands, f32 MXU accumulation, f32 elementwise (bias/ReLU).
    h = jnp.dot(x_ref[...], w0_ref[...], preferred_element_type=jnp.float32) + b0_ref[...]
    h = jnp.maximum(h, 0.0).astype(jnp.bfloat16)
    h = jnp.dot(h, w1_ref[...], preferred_element_type=jnp.float32) + b1_ref[...]
    h = jnp.maximum(h, 0.0).astype(jnp.bfloat16)
    o_ref[...] = (jnp.dot(h, w2_ref[...], preferred_element_type=jnp.float32)
                  + b2_ref[...]).astype(o_ref.dtype)


def mlp3(x, p, *, tm=128, out_dtype=jnp.float32):
    """Row-tiled 3-layer MLP (Linear-ReLU-Linear-ReLU-Linear)."""
    w0, b0, w1, b1, w2, b2 = p
    n, din = x.shape
    dout = w2.shape[1]
    tm = min(tm, _round_up(n, 8))
    n_pad = _round_up(n, tm)
    xb = x.astype(jnp.bfloat16)
    if n_pad != n:
        xb = jnp.pad(xb, ((0, n_pad - n), (0, 0)))
    weights = (w0, b0, w1, b1, w2, b2)
    out = pl.pallas_call(
        _mlp3_kernel,
        out_shape=jax.ShapeDtypeStruct((n_pad, dout), out_dtype),
        grid=(n_pad // tm,),
        in_specs=[pl.BlockSpec((tm, din), lambda i: (i, 0))]
                 + [pl.BlockSpec(a.shape, lambda i, nd=a.ndim: (0,) * nd)
                    for a in weights],
        out_specs=pl.BlockSpec((tm, dout), lambda i: (i, 0)),
        compiler_params=pltpu.CompilerParams(dimension_semantics=("parallel",)),
    )(xb, *weights)
    return out[:n] if n_pad != n else out


def _linear_kernel(x_ref, w_ref, b_ref, o_ref, *, relu):
    y = jnp.dot(x_ref[...], w_ref[...], preferred_element_type=jnp.float32) + b_ref[...]
    if relu:
        y = jnp.maximum(y, 0.0)
    o_ref[...] = y.astype(o_ref.dtype)


def linear_rowtiled(x, w, b, *, relu=False, tm=128, out_dtype=jnp.float32):
    """Row-tiled Linear (+optional ReLU)."""
    n, din = x.shape
    dout = w.shape[1]
    tm = min(tm, _round_up(n, 8))
    n_pad = _round_up(n, tm)
    xb = x.astype(jnp.bfloat16)
    if n_pad != n:
        xb = jnp.pad(xb, ((0, n_pad - n), (0, 0)))
    out = pl.pallas_call(
        functools.partial(_linear_kernel, relu=relu),
        out_shape=jax.ShapeDtypeStruct((n_pad, dout), out_dtype),
        grid=(n_pad // tm,),
        in_specs=[pl.BlockSpec((tm, din), lambda i: (i, 0)),
                  pl.BlockSpec(w.shape, lambda i: (0, 0)),
                  pl.BlockSpec(b.shape, lambda i: (0, 0))],
        out_specs=pl.BlockSpec((tm, dout), lambda i: (i, 0)),
        compiler_params=pltpu.CompilerParams(dimension_semantics=("parallel",)),
    )(xb, w, b)
    return out[:n] if n_pad != n else out


def _linear_ktiled_kernel(x_ref, w_ref, b_ref, o_ref, acc_ref):
    # K-streamed linear: f32 VMEM accumulator, writeback on the last K step.
    @pl.when(pl.program_id(0) == 0)
    def _():
        acc_ref[...] = jnp.zeros_like(acc_ref)

    acc_ref[...] += jnp.dot(x_ref[...], w_ref[...],
                            preferred_element_type=jnp.float32)

    @pl.when(pl.program_id(0) == pl.num_programs(0) - 1)
    def _():
        o_ref[...] = (acc_ref[...] + b_ref[...]).astype(o_ref.dtype)


def linear_ktiled(x, w, b, *, tk=512, out_dtype=jnp.float32):
    """Linear for a huge reduction dim (e.g. BEV flatten): stream K tiles of the
    bf16 weight through VMEM; the (rows, dout) f32 accumulator stays resident."""
    n, k = x.shape
    dout = w.shape[1]
    if k % tk != 0:
        tk = k                       # fallback for non-divisible toy sizes
    xb = x.astype(jnp.bfloat16)
    return pl.pallas_call(
        _linear_ktiled_kernel,
        out_shape=jax.ShapeDtypeStruct((n, dout), out_dtype),
        grid=(k // tk,),
        in_specs=[pl.BlockSpec((n, tk), lambda kk: (0, kk)),
                  pl.BlockSpec((tk, dout), lambda kk: (kk, 0)),
                  pl.BlockSpec((1, dout), lambda kk: (0, 0))],
        out_specs=pl.BlockSpec((n, dout), lambda kk: (0, 0)),
        scratch_shapes=[pltpu.VMEM((n, dout), jnp.float32)],
        compiler_params=pltpu.CompilerParams(dimension_semantics=("arbitrary",)),
    )(xb, w, b)


# --------------------- per-object MOE aggregation kernel ----------------------
def _agg_kernel(idx_ref, cnt_ref,                       # scalar prefetch (SMEM)
                allemb_hbm,                             # (N_pad, D_EMB) f32 in HBM
                bevmap_ref,                             # (1, 1, D_BEV+D_MAP)
                g0a_ref, g0bm_ref, gb0_ref,             # gating layer 0 (split rows)
                g1_ref, gb1_ref, g2_ref, gb2_ref,       # gating layers 1, 2
                o_ref,                                  # (1, NUM_MODES, D_EMB)
                agent_buf, sems):                       # scratch
    e = pl.program_id(0)

    # --- gather up to SEG_MAX contiguous blocks of agent rows straight from HBM ---
    # Each (cav, object) hit contributes NUM_MODES consecutive rows; we copy
    # M_PAD(=8) rows per segment so every DMA destination is sublane aligned.
    for s in range(SEG_MAX):
        pltpu.make_async_copy(
            allemb_hbm.at[pl.ds(idx_ref[e, s], M_PAD)],
            agent_buf.at[pl.ds(s * M_PAD, M_PAD)],
            sems.at[s]).start()
    for s in range(SEG_MAX):
        pltpu.make_async_copy(
            allemb_hbm.at[pl.ds(0, M_PAD)],
            agent_buf.at[pl.ds(s * M_PAD, M_PAD)],
            sems.at[s]).wait()

    agent = agent_buf[...]                              # (P_MAX, D_EMB) f32
    agent_bf = agent.astype(jnp.bfloat16)

    # --- validity mask over the gathered rows (every ego object always has at
    #     least its own NUM_MODES rows, so at least one row is valid) ---
    nseg = cnt_ref[e]
    rows = jax.lax.broadcasted_iota(jnp.int32, (1, P_MAX), 1)
    valid = (rows // M_PAD < nseg) & ((rows % M_PAD) < NUM_MODES)
    neg = jnp.where(valid, 0.0, -1e30)                  # (1, P_MAX) f32

    # --- gating estimators, all 6 modes batched ---
    # Layer 0: agent rows use the first D_EMB weight rows (batched matmul over
    # modes); bev+map are constant across the P rows, so their contribution is a
    # per-ego (M, 1, D_TOT) bias — no (P, D_TOT) concat/broadcast is built.
    bevmap = bevmap_ref[0].astype(jnp.bfloat16)                       # (1, DBM)
    bevmap_b = jnp.broadcast_to(bevmap, (NUM_MODES, 1, D_BEV + D_MAP))
    bias0 = jnp.einsum('mod,mde->moe', bevmap_b, g0bm_ref[...],
                       preferred_element_type=jnp.float32) + gb0_ref[...]
    agent_b = jnp.broadcast_to(agent_bf, (NUM_MODES, P_MAX, D_EMB))
    h1 = jnp.maximum(
        jnp.einsum('mpd,mde->mpe', agent_b, g0a_ref[...],
                   preferred_element_type=jnp.float32) + bias0, 0.0)
    h2 = jnp.maximum(
        jnp.einsum('mpd,mde->mpe', h1.astype(jnp.bfloat16), g1_ref[...],
                   preferred_element_type=jnp.float32) + gb1_ref[...], 0.0)
    # Layer 2 has output width 1: do it as a VPU multiply + lane reduce instead
    # of 6 N=1 MXU matmuls.
    logits = jnp.sum(h2 * g2_ref[...].astype(jnp.float32), axis=-1) + gb2_ref[...]

    # --- masked softmax over the CAV-prediction axis, per mode ---
    logits = logits + neg                               # (M, P_MAX)
    mmax = jnp.max(logits, axis=-1, keepdims=True)
    p_exp = jnp.exp(logits - mmax)
    w = p_exp / jnp.sum(p_exp, axis=-1, keepdims=True)  # (M, P_MAX)

    # --- weighted sum of the agent embeddings (MOEV2: agent features only) ---
    agg = jnp.dot(w.astype(jnp.bfloat16), agent_bf,
                  preferred_element_type=jnp.float32)   # (M, D_EMB)
    o_ref[0] = agg.astype(o_ref.dtype)


def aggregate(seg_idx, counts, all_emb, bevmap, gating):
    """Per-ego-object MOE aggregation with in-kernel DMA gather (scalar prefetch)."""
    n_ego = bevmap.shape[0]
    weights = (gating['g0a'], gating['g0bm'], gating['gb0'],
               gating['g1'], gating['gb1'], gating['g2'], gating['gb2'])

    def const_spec(a):
        nd = a.ndim
        return pl.BlockSpec(a.shape, lambda e, idx, cnt, nd=nd: (0,) * nd)

    # NOTE: at original dims (D_TOT=768) the ~17 MB of bf16 gating weights should
    # be single-buffered (constant index map; double buffering buys nothing) to
    # stay inside v7x's 64 MiB VMEM.  At these toy dims the default is fine.
    grid_spec = pltpu.PrefetchScalarGridSpec(
        num_scalar_prefetch=2,
        grid=(n_ego,),
        in_specs=[pl.BlockSpec(memory_space=pl.ANY),                       # all_emb
                  pl.BlockSpec((1, 1, D_BEV + D_MAP),
                               lambda e, idx, cnt: (e, 0, 0))]             # bev+map
                 + [const_spec(a) for a in weights],
        out_specs=pl.BlockSpec((1, NUM_MODES, D_EMB),
                               lambda e, idx, cnt: (e, 0, 0)),
        scratch_shapes=[pltpu.VMEM((P_MAX, D_EMB), jnp.float32),
                        pltpu.SemaphoreType.DMA((SEG_MAX,))])
    return pl.pallas_call(
        _agg_kernel,
        out_shape=jax.ShapeDtypeStruct((n_ego, NUM_MODES, D_EMB), jnp.bfloat16),
        grid_spec=grid_spec,
        compiler_params=pltpu.CompilerParams(dimension_semantics=("parallel",)),
    )(seg_idx, counts, all_emb, bevmap, *weights)


# ------------------ fused trajectory decoder + score estimator ----------------
def _decode_kernel(comb_ref, combf_ref,
                   tw0, tb0, tw1, tb1, tw2, tb2,
                   sw0, sb0, sw1, sb1, sw2, sb2,
                   traj_ref, score_ref):
    comb = comb_ref[0]                                   # (M, D_EMB) bf16
    # trajectory decoder MLP on all NUM_MODES rows of this ego object at once
    h = jnp.maximum(jnp.dot(comb, tw0[...], preferred_element_type=jnp.float32)
                    + tb0[...], 0.0).astype(jnp.bfloat16)
    h = jnp.maximum(jnp.dot(h, tw1[...], preferred_element_type=jnp.float32)
                    + tb1[...], 0.0).astype(jnp.bfloat16)
    traj = jnp.dot(h, tw2[...], preferred_element_type=jnp.float32) + tb2[...]
    traj_ref[0] = traj.astype(traj_ref.dtype)

    # score estimator on the flattened (1, M*D_EMB) view of the same block
    flat = combf_ref[0]                                  # (1, M*D_EMB) bf16
    s = jnp.maximum(jnp.dot(flat, sw0[...], preferred_element_type=jnp.float32)
                    + sb0[...], 0.0).astype(jnp.bfloat16)
    s = jnp.maximum(jnp.dot(s, sw1[...], preferred_element_type=jnp.float32)
                    + sb1[...], 0.0).astype(jnp.bfloat16)
    score_ref[0] = (jnp.dot(s, sw2[...], preferred_element_type=jnp.float32)
                    + sb2[...]).astype(score_ref.dtype)


def decode_heads(combined, traj_params, score_params):
    # TODO(synk): at original dims the 3072x3072 score-head weights (~37 MB bf16)
    # should be K-tiled/streamed like linear_ktiled instead of held resident.
    n_ego = combined.shape[0]
    combined_flat = combined.reshape(n_ego, 1, NUM_MODES * D_EMB)
    weights = (*traj_params, *score_params)
    traj, scores = pl.pallas_call(
        _decode_kernel,
        out_shape=(jax.ShapeDtypeStruct((n_ego, NUM_MODES, T * S), jnp.float32),
                   jax.ShapeDtypeStruct((n_ego, 1, NUM_MODES), jnp.float32)),
        grid=(n_ego,),
        in_specs=[pl.BlockSpec((1, NUM_MODES, D_EMB), lambda e: (e, 0, 0)),
                  pl.BlockSpec((1, 1, NUM_MODES * D_EMB), lambda e: (e, 0, 0))]
                 + [pl.BlockSpec(a.shape, lambda e, nd=a.ndim: (0,) * nd)
                    for a in weights],
        out_specs=(pl.BlockSpec((1, NUM_MODES, T * S), lambda e: (e, 0, 0)),
                   pl.BlockSpec((1, 1, NUM_MODES), lambda e: (e, 0, 0))),
        compiler_params=pltpu.CompilerParams(dimension_semantics=("parallel",)),
    )(combined, combined_flat, *weights)
    return traj, scores[:, 0, :]


# ------------------------------- forward pass ---------------------------------
def motion_aggregator_moev2_forward(params, features_to_aggregate, pred_scores,
                                    bev_features, batch_sample_count,
                                    center_objects_id_to_aggregate,
                                    map_polylines_feature, map_valid_mask,
                                    map_polylines_center):
    # pred_scores, batch_sample_count, map_polylines_center are accepted for
    # signature fidelity but (as in the reference forward) never used.
    M = NUM_MODES
    n_ego = features_to_aggregate[0].shape[0]

    # --- feature_encoder over every CAV prediction (row-tiled Pallas MLP) ---
    all_feats = jnp.concatenate(
        [f.reshape(f.shape[0] * M, T * S) for f in features_to_aggregate], axis=0)
    all_emb = mlp3(all_feats, params['feature_encoder'],
                   tm=16, out_dtype=jnp.float32)                  # (sumN*M, D_EMB)
    # pad so the M_PAD-row gather segments in the aggregation kernel stay in bounds
    all_emb = jnp.pad(all_emb, ((0, M_PAD), (0, 0)))

    # --- bev_encoder: im2col -> row-tiled matmul+ReLU -> K-tiled Linear ---
    # TODO(synk): at original dims (48x176x256) the im2col should be assembled
    # in-kernel via overlapping BlockSpec windows/DMA to avoid the 9x HBM copy.
    x = jnp.transpose(bev_features[0], (1, 2, 0))                 # NCHW -> HWC
    xp = jnp.pad(x, ((1, 1), (1, 1), (0, 0)))
    cols = [xp[kh:kh + BEV_H, kw:kw + BEV_W, :]
            for kh in range(3) for kw in range(3)]
    im2col = jnp.concatenate(cols, axis=-1).reshape(BEV_H * BEV_W, 9 * BEV_CIN)
    conv_out = linear_rowtiled(im2col, params['bev_conv_w'], params['bev_conv_b'],
                               relu=True, tm=64, out_dtype=jnp.bfloat16)
    bev_flat = conv_out.reshape(1, BEV_H * BEV_W * BEV_COUT)      # HWC flatten
    bev_emb = linear_ktiled(bev_flat, params['bev_lin_w'], params['bev_lin_b'],
                            tk=512, out_dtype=jnp.float32)        # (1, D_BEV)

    # --- map_encoder over the ego CAV's objects (row-tiled Pallas MLP) ---
    ego_map = map_polylines_feature[0] * map_valid_mask[0][..., None]
    map_emb = mlp3(ego_map.reshape(n_ego, MAP_L * MAP_D), params['map_encoder'],
                   tm=8, out_dtype=jnp.float32)                   # (n_ego, D_MAP)

    bevmap = jnp.concatenate(
        [jnp.broadcast_to(bev_emb, (n_ego, D_BEV)), map_emb],
        axis=-1).reshape(n_ego, 1, D_BEV + D_MAP)

    # --- host-side grouping of predictions by center_object_id (glue) ---
    # TODO(synk): the python-dict grouping by object id is data-dependent and is
    # done host-side with numpy; it becomes a fixed-bucket (SEG_MAX) segment table
    # of contiguous NUM_MODES-row blocks, consumed via scalar prefetch + DMA.
    counts_per_cav = [int(f.shape[0]) for f in features_to_aggregate]
    row_offsets = np.concatenate(
        [[0], np.cumsum([c * M for c in counts_per_cav])[:-1]]).astype(np.int64)
    ids_list = [np.asarray(ids).tolist() for ids in center_objects_id_to_aggregate]
    seg_idx = np.zeros((n_ego, SEG_MAX), np.int32)
    counts = np.zeros((n_ego,), np.int32)
    for i, oid in enumerate(ids_list[0]):
        segs = []
        for c, ids_c in enumerate(ids_list):
            for j, v in enumerate(ids_c):
                if v == oid:
                    segs.append(int(row_offsets[c]) + j * M)
        assert 1 <= len(segs) <= SEG_MAX
        seg_idx[i, :len(segs)] = segs
        counts[i] = len(segs)

    # --- per-object MOE aggregation (gather + batched gating + softmax, Pallas) ---
    combined = aggregate(jnp.asarray(seg_idx), jnp.asarray(counts),
                         all_emb, bevmap, params['gating'])       # (n_ego, M, D_EMB)

    # --- fused trajectory_decoder & score_estimator (Pallas) ---
    traj, final_scores = decode_heads(combined, params['trajectory_decoder'],
                                      params['score_estimator'])
    final_trajectories = traj.reshape(n_ego, M, T, S)
    return final_trajectories, final_scores


# ------------------------------ parameter init --------------------------------
def mk_linear(key, din, dout):
    kw, kb = jax.random.split(key)
    w = (jax.random.normal(kw, (din, dout), jnp.float32)
         * (1.0 / np.sqrt(din))).astype(jnp.bfloat16)
    b = jax.random.normal(kb, (1, dout), jnp.float32) * 0.01
    return w, b


def mk_mlp3(key, din, dout):
    k0, k1, k2 = jax.random.split(key, 3)
    w0, b0 = mk_linear(k0, din, din)
    w1, b1 = mk_linear(k1, din, din)
    w2, b2 = mk_linear(k2, din, dout)
    return (w0, b0, w1, b1, w2, b2)


def mk_gating(key):
    ps = [mk_mlp3(k, D_TOT, 1) for k in jax.random.split(key, NUM_MODES)]
    w0 = jnp.stack([p[0] for p in ps])                 # (M, D_TOT, D_TOT)
    b0 = jnp.stack([p[1] for p in ps])                 # (M, 1, D_TOT)
    w1 = jnp.stack([p[2] for p in ps])
    b1 = jnp.stack([p[3] for p in ps])
    w2 = jnp.stack([p[4] for p in ps])                 # (M, D_TOT, 1)
    b2 = jnp.stack([p[5] for p in ps])                 # (M, 1, 1)
    return dict(
        g0a=w0[:, :D_EMB, :],                          # rows that multiply agent emb
        g0bm=w0[:, D_EMB:, :],                         # rows that multiply [bev, map]
        gb0=b0,
        g1=w1, gb1=b1,
        g2=jnp.transpose(w2, (0, 2, 1)),               # (M, 1, D_TOT)
        gb2=b2.reshape(NUM_MODES, 1))


# ----------------------------------- main --------------------------------------
if __name__ == "__main__":
    key = jax.random.PRNGKey(0)
    keys = jax.random.split(key, 16)

    params = {
        'feature_encoder': mk_mlp3(keys[0], T * S, D_EMB),
        'map_encoder': mk_mlp3(keys[1], MAP_L * MAP_D, D_MAP),
        'trajectory_decoder': mk_mlp3(keys[3], D_EMB, T * S),
        'score_estimator': mk_mlp3(keys[4], NUM_MODES * D_EMB, NUM_MODES),
        'gating': mk_gating(keys[5]),
        # conv weight in (kh, kw, Cin, Cout)-flattened = (9*Cin, Cout) im2col order
        'bev_conv_w': (jax.random.normal(keys[6], (9 * BEV_CIN, BEV_COUT),
                                         jnp.float32) * 0.05).astype(jnp.bfloat16),
        'bev_conv_b': jax.random.normal(keys[7], (1, BEV_COUT), jnp.float32) * 0.01,
        'bev_lin_w': (jax.random.normal(keys[8],
                                        (BEV_H * BEV_W * BEV_COUT, D_BEV),
                                        jnp.float32) * 0.01).astype(jnp.bfloat16),
        'bev_lin_b': jax.random.normal(keys[9], (1, D_BEV), jnp.float32) * 0.01,
    }

    # two CAVs: ego predicts objects [0,1,2,3]; CAV1 predicts [1,3,7]
    N0, N1 = 4, 3
    feat0 = jax.random.normal(keys[10], (N0, NUM_MODES, T, S), jnp.float32)
    feat1 = jax.random.normal(keys[11], (N1, NUM_MODES, T, S), jnp.float32)
    ids0 = np.array([0, 1, 2, 3], dtype=np.int64)
    ids1 = np.array([1, 3, 7], dtype=np.int64)
    bev = jax.random.normal(keys[12], (1, BEV_CIN, BEV_H, BEV_W), jnp.float32)
    map0 = jax.random.normal(keys[13], (N0, MAP_L, MAP_D), jnp.float32)
    map1 = jax.random.normal(keys[14], (N1, MAP_L, MAP_D), jnp.float32)
    mask0 = (jax.random.uniform(keys[15], (N0, MAP_L)) > 0.3).astype(jnp.float32)
    mask1 = jnp.ones((N1, MAP_L), jnp.float32)
    pred_scores = [jnp.ones((N0, NUM_MODES)), jnp.ones((N1, NUM_MODES))]
    map_centers = [jnp.zeros((N0, MAP_L, 3)), jnp.zeros((N1, MAP_L, 3))]

    traj, scores = motion_aggregator_moev2_forward(
        params, [feat0, feat1], pred_scores, bev, N0, [ids0, ids1],
        [map0, map1], [mask0, mask1], map_centers)
    jax.block_until_ready((traj, scores))

    assert traj.shape == (N0, NUM_MODES, T, S), traj.shape
    assert scores.shape == (N0, NUM_MODES), scores.shape
    assert bool(jnp.all(jnp.isfinite(traj))) and bool(jnp.all(jnp.isfinite(scores)))
    print("KERNEL_OK")
</pallas_src>

<mosaic_0001>
module attributes {stable_mosaic.version = 11 : i64} {
  func.func @_mlp3_kernel(%arg0: i32, %arg1: memref<16x50xbf16, #tpu.memory_space<vmem>>, %arg2: memref<50x50xbf16, #tpu.memory_space<vmem>>, %arg3: memref<1x50xf32, #tpu.memory_space<vmem>>, %arg4: memref<50x50xbf16, #tpu.memory_space<vmem>>, %arg5: memref<1x50xf32, #tpu.memory_space<vmem>>, %arg6: memref<50x64xbf16, #tpu.memory_space<vmem>>, %arg7: memref<1x64xf32, #tpu.memory_space<vmem>>, %arg8: memref<16x64xf32, #tpu.memory_space<vmem>>) attributes {dimension_semantics = [#tpu.dimension_semantics<parallel>], iteration_bounds = array<i64: 3>, scalar_prefetch = 0 : i64, scratch_operands = 0 : i64, tpu.core_type = #tpu.core_type<tc>, window_params = [{transform_indices = @transform_0, window_bounds = array<i64: 16, 50>}, {pipeline_mode = #tpu.pipeline_mode<synchronous>, transform_indices = @transform_1, window_bounds = array<i64: 50, 50>}, {pipeline_mode = #tpu.pipeline_mode<synchronous>, transform_indices = @transform_2, window_bounds = array<i64: 1, 50>}, {pipeline_mode = #tpu.pipeline_mode<synchronous>, transform_indices = @transform_3, window_bounds = array<i64: 50, 50>}, {pipeline_mode = #tpu.pipeline_mode<synchronous>, transform_indices = @transform_4, window_bounds = array<i64: 1, 50>}, {pipeline_mode = #tpu.pipeline_mode<synchronous>, transform_indices = @transform_5, window_bounds = array<i64: 50, 64>}, {pipeline_mode = #tpu.pipeline_mode<synchronous>, transform_indices = @transform_6, window_bounds = array<i64: 1, 64>}, {transform_indices = @transform_7, window_bounds = array<i64: 16, 64>}]} {
    %c0 = arith.constant 0 : index
    %c0_0 = arith.constant 0 : index
    %0 = vector.load %arg1[%c0, %c0_0] : memref<16x50xbf16, #tpu.memory_space<vmem>>, vector<16x50xbf16>
    %c0_1 = arith.constant 0 : index
    %c0_2 = arith.constant 0 : index
    %1 = vector.load %arg2[%c0_1, %c0_2] : memref<50x50xbf16, #tpu.memory_space<vmem>>, vector<50x50xbf16>
    %cst = arith.constant dense<0.000000e+00> : vector<16x50xf32>
    %2 = tpu.matmul %0, %1, %cst {dimension_numbers = #tpu.dot_dimension_numbers<[1], [0], [0], [1], [0, 0, 1, 1], [], []>} : vector<16x50xbf16>, vector<50x50xbf16>, vector<16x50xf32> -> vector<16x50xf32>
    %c0_3 = arith.constant 0 : index
    %c0_4 = arith.constant 0 : index
    %3 = vector.load %arg3[%c0_3, %c0_4] : memref<1x50xf32, #tpu.memory_space<vmem>>, vector<1x50xf32>
    %4 = vector.broadcast %3 : vector<1x50xf32> to vector<16x50xf32>
    %5 = arith.addf %2, %4 : vector<16x50xf32>
    %cst_5 = arith.constant 0.000000e+00 : f32
    %6 = vector.broadcast %cst_5 : f32 to vector<16x50xf32>
    %7 = arith.maximumf %5, %6 : vector<16x50xf32>
    %8 = arith.truncf %7 : vector<16x50xf32> to vector<16x50xbf16>
    %c0_6 = arith.constant 0 : index
    %c0_7 = arith.constant 0 : index
    %9 = vector.load %arg4[%c0_6, %c0_7] : memref<50x50xbf16, #tpu.memory_space<vmem>>, vector<50x50xbf16>
    %cst_8 = arith.constant dense<0.000000e+00> : vector<16x50xf32>
    %10 = tpu.matmul %8, %9, %cst_8 {dimension_numbers = #tpu.dot_dimension_numbers<[1], [0], [0], [1], [0, 0, 1, 1], [], []>} : vector<16x50xbf16>, vector<50x50xbf16>, vector<16x50xf32> -> vector<16x50xf32>
    %c0_9 = arith.constant 0 : index
    %c0_10 = arith.constant 0 : index
    %11 = vector.load %arg5[%c0_9, %c0_10] : memref<1x50xf32, #tpu.memory_space<vmem>>, vector<1x50xf32>
    %12 = vector.broadcast %11 : vector<1x50xf32> to vector<16x50xf32>
    %13 = arith.addf %10, %12 : vector<16x50xf32>
    %cst_11 = arith.constant 0.000000e+00 : f32
    %14 = vector.broadcast %cst_11 : f32 to vector<16x50xf32>
    %15 = arith.maximumf %13, %14 : vector<16x50xf32>
    %16 = arith.truncf %15 : vector<16x50xf32> to vector<16x50xbf16>
    %c0_12 = arith.constant 0 : index
    %c0_13 = arith.constant 0 : index
    %17 = vector.load %arg6[%c0_12, %c0_13] : memref<50x64xbf16, #tpu.memory_space<vmem>>, vector<50x64xbf16>
    %cst_14 = arith.constant dense<0.000000e+00> : vector<16x64xf32>
    %18 = tpu.matmul %16, %17, %cst_14 {dimension_numbers = #tpu.dot_dimension_numbers<[1], [0], [0], [1], [0, 0, 1, 1], [], []>} : vector<16x50xbf16>, vector<50x64xbf16>, vector<16x64xf32> -> vector<16x64xf32>
    %c0_15 = arith.constant 0 : index
    %c0_16 = arith.constant 0 : index
    %19 = vector.load %arg7[%c0_15, %c0_16] : memref<1x64xf32, #tpu.memory_space<vmem>>, vector<1x64xf32>
    %20 = vector.broadcast %19 : vector<1x64xf32> to vector<16x64xf32>
    %21 = arith.addf %18, %20 : vector<16x64xf32>
    %c0_17 = arith.constant 0 : index
    %c0_18 = arith.constant 0 : index
    %22 = vector.load %arg8[%c0_17, %c0_18] : memref<16x64xf32, #tpu.memory_space<vmem>>, vector<16x64xf32>
    tpu.vector_store %arg8[%c0_17, %c0_18], %21 {strides = array<i32>} : memref<16x64xf32, #tpu.memory_space<vmem>>, vector<16x64xf32>,
    return
  }
  func.func @transform_0(%arg0: i32) -> (i32, i32) {
    %c0_i32 = arith.constant 0 : i32
    %c0_i32_0 = arith.constant 0 : i32
    return %arg0, %c0_i32 : i32, i32
  }
  func.func @transform_1(%arg0: i32) -> (i32, i32) {
    %c0_i32 = arith.constant 0 : i32
    %c0_i32_0 = arith.constant 0 : i32
    %c0_i32_1 = arith.constant 0 : i32
    return %c0_i32, %c0_i32_0 : i32, i32
  }
  func.func @transform_2(%arg0: i32) -> (i32, i32) {
    %c0_i32 = arith.constant 0 : i32
    %c0_i32_0 = arith.constant 0 : i32
    %c0_i32_1 = arith.constant 0 : i32
    return %c0_i32, %c0_i32_0 : i32, i32
  }
  func.func @transform_3(%arg0: i32) -> (i32, i32) {
    %c0_i32 = arith.constant 0 : i32
    %c0_i32_0 = arith.constant 0 : i32
    %c0_i32_1 = arith.constant 0 : i32
    return %c0_i32, %c0_i32_0 : i32, i32
  }
  func.func @transform_4(%arg0: i32) -> (i32, i32) {
    %c0_i32 = arith.constant 0 : i32
    %c0_i32_0 = arith.constant 0 : i32
    %c0_i32_1 = arith.constant 0 : i32
    return %c0_i32, %c0_i32_0 : i32, i32
  }
  func.func @transform_5(%arg0: i32) -> (i32, i32) {
    %c0_i32 = arith.constant 0 : i32
    %c0_i32_0 = arith.constant 0 : i32
    %c0_i32_1 = arith.constant 0 : i32
    return %c0_i32, %c0_i32_0 : i32, i32
  }
  func.func @transform_6(%arg0: i32) -> (i32, i32) {
    %c0_i32 = arith.constant 0 : i32
    %c0_i32_0 = arith.constant 0 : i32
    %c0_i32_1 = arith.constant 0 : i32
    return %c0_i32, %c0_i32_0 : i32, i32
  }
  func.func @transform_7(%arg0: i32) -> (i32, i32) {
    %c0_i32 = arith.constant 0 : i32
    %c0_i32_0 = arith.constant 0 : i32
    return %arg0, %c0_i32 : i32, i32
  }
}

</mosaic_0001>

<llo_original>
// kernel: tpu_custom_call.1
$region0: #{tpu_custom_call.1}
  #allocation0 [shape = 'u32[]', space=smem, size = 0x4, offset = 0x4, fixed_abs, tag = 'smem constant byte address 0x4 - core index']
  #allocation1 [shape = 'u32[144,128]{1,0:T(1,128)}', space=vmem, size = 0x12000, scoped, tag = 'internal scratch']
  %s0 = inlined_call_operand.hbm [shape: bf16[48,50], index: 0, kind: input, shape index: {}]
  %s1 = inlined_call_operand.hbm [shape: bf16[50,50], index: 1, kind: input, shape index: {}]
  %s2 = inlined_call_operand.vmem [shape: f32[1,50], index: 2, kind: input, shape index: {}]
  %s3 = inlined_call_operand.hbm [shape: bf16[50,50], index: 3, kind: input, shape index: {}]
  %s4 = inlined_call_operand.vmem [shape: f32[1,50], index: 4, kind: input, shape index: {}]
  %s5 = inlined_call_operand.hbm [shape: bf16[50,64], index: 5, kind: input, shape index: {}]
  %s6 = inlined_call_operand.vmem [shape: f32[1,64], index: 6, kind: input, shape index: {}]
  %s7 = inlined_call_operand.hbm [shape: f32[48,64], index: 7, kind: output, shape index: {}]
  %s8 = sld [smem:[#allocation0]]
  $region77: #{tpu_custom_call.1} parent=0
    _
  %s10 = ssub.s32 1, %s8
  %s11 = scalar_select 0, %s10, %s8
  $region1: #{tpu_custom_call.1} parent=0
    #allocation2 [shape = 'u8[8192]{0}', space=vmem, size = 0x2000, scoped, tag = 'input window, operand 0']
    #allocation3 [shape = 's32[2]{0}', space=sflag, size = 0x8, scoped, tag = 'scoped memory for tpu_custom_call.1']
    #allocation4 [shape = 's32[2]{0}', space=sflag, size = 0x8, scoped, tag = 'scoped memory for tpu_custom_call.1']
    #allocation5 [shape = 'u8[14336]{0}', space=vmem, size = 0x3800, scoped, tag = 'input window, operand 1, single buffered']
    #allocation6 [shape = 's32[1]{0}', space=sflag, size = 0x4, scoped, tag = 'scoped memory for tpu_custom_call.1']
    #allocation7 [shape = 'u8[14336]{0}', space=vmem, size = 0x3800, scoped, tag = 'input window, operand 3, single buffered']
    #allocation8 [shape = 'u8[14336]{0}', space=vmem, size = 0x3800, scoped, tag = 'input window, operand 5, single buffered']
    #allocation9 [shape = 's32[1]{0}', space=sflag, size = 0x4, scoped, tag = 'scoped memory for tpu_custom_call.1']
    #allocation10 [shape = 'u8[16384]{0}', space=vmem, size = 0x4000, scoped, tag = 'output window, operand 0']
    %12 = vsyncpa [#allocation3], 0
    %s13 = scalar_lea.sflag [#allocation3], 1
    %14 = vsyncpa %s13, 0
    %15 = vsyncpa [#allocation6], 0
    %16 = vsyncpa [#allocation9], 0
    %17 = vsyncpa [#allocation4], 0
    %s18 = scalar_lea.sflag [#allocation4], 1
    %19 = vsyncpa %s18, 0
    loop: start=0, step=1, limit=5
    $region2: #{tpu_custom_call.1} parent=1 // loop_pre_header
      _
    $region3: #{tpu_custom_call.1} parent=1 // loop_header
      %s21 = sphi 0, %s25
      %p22 = scmp.ge.s32.totalorder %s21, 5
      %s31 = sphi 0, %s33
      %s34 = sphi 0, %s31
      %s35 = sphi 0, %s34
      %s51 = sphi 0, %s35
      %s55 = sphi 0, %s55
      %s57 = sphi 0, %s55
      %s58 = sphi 0, %s57
      %s72 = sphi 0, %s58
      %s76 = sphi 0, %s76
      %s78 = sphi 0, %s76
      %s79 = sphi 0, %s78
      %s93 = sphi 0, %s79
      %s97 = sphi 0, %s97
      %s99 = sphi 0, %s97
      %s100 = sphi 0, %s99
      %s114 = sphi 0, %s100
      %s118 = sphi 0, %s118
      %s120 = sphi 0, %s118
      %s121 = sphi 0, %s120
      %s135 = sphi 0, %s121
      %s139 = sphi 0, %s139
      %s141 = sphi 0, %s139
      %s142 = sphi 0, %s141
      %s156 = sphi 0, %s142
      %s160 = sphi 0, %s160
      %s162 = sphi 0, %s160
      %s163 = sphi 0, %s162
      %s177 = sphi 0, %s163
      %s183 = sphi 0, %s185
      %s186 = sphi 0, %s183
      %s187 = sphi 0, %s186
      %s203 = sphi 0, %s187
    $region4: #{tpu_custom_call.1} parent=1 // loop_header_branch
      %24 = sbr.rel (%p22) target = $region8
    $region5: #{tpu_custom_call.1} parent=1 // loop_body
      %s26 = ssub.s32 %s21, 1
      %s27 = ssub.s32 %s21, 2
      %s28 = sadd.s32 %s21, 1
      %s29 = ssub.s32 %s21, %s28
      %p30 = scmp.eq.s32.totalorder %s29, 0
      %s32 = sadd.s32 %s31, 1
      %s33 = scalar_select %p30, %s31, %s32
      %p36 = pneg %p30
      %p37 = scmp.eq.s32.totalorder %s21, 2
      %p38 = por %p36, %p37
      %p39 = scmp.ne.s32.totalorder %s31, %s34
      %p40 = scmp.eq.s32.totalorder %s21, 0
      %p41 = por %p39, %p40
      %p42 = scmp.ne.s32.totalorder %s31, %s34
      %p43 = scmp.eq.s32.totalorder %s26, 2
      %p44 = por %p42, %p43
      %p45 = scmp.ne.s32.totalorder %s34, %s35
      %p46 = scmp.eq.s32.totalorder %s26, 0
      %p47 = por %p45, %p46
      %p48 = scmp.ne.s32.totalorder %s34, %s35
      %p49 = scmp.eq.s32.totalorder %s27, 2
      %p50 = por %p48, %p49
      %p52 = scmp.ne.s32.totalorder %s35, %s51
      %p53 = scmp.eq.s32.totalorder %s27, 0
      %p54 = por %p52, %p53
      %s56 = sadd.s32 %s55, 1
      %p59 = scmp.eq.s32.totalorder %s21, 2
      %p60 = scmp.ne.s32.totalorder %s55, %s57
      %p61 = scmp.eq.s32.totalorder %s21, 0
      %p62 = por %p60, %p61
      %p63 = scmp.ne.s32.totalorder %s55, %s57
      %p64 = scmp.eq.s32.totalorder %s26, 2
      %p65 = por %p63, %p64
      %p66 = scmp.ne.s32.totalorder %s57, %s58
      %p67 = scmp.eq.s32.totalorder %s26, 0
      %p68 = por %p66, %p67
      %p69 = scmp.ne.s32.totalorder %s57, %s58
      %p70 = scmp.eq.s32.totalorder %s27, 2
      %p71 = por %p69, %p70
      %p73 = scmp.ne.s32.totalorder %s58, %s72
      %p74 = scmp.eq.s32.totalorder %s27, 0
      %p75 = por %p73, %p74
      %s77 = sadd.s32 %s76, 1
      %p80 = scmp.eq.s32.totalorder %s21, 2
      %p81 = scmp.ne.s32.totalorder %s76, %s78
      %p82 = scmp.eq.s32.totalorder %s21, 0
      %p83 = por %p81, %p82
      %p84 = scmp.ne.s32.totalorder %s76, %s78
      %p85 = scmp.eq.s32.totalorder %s26, 2
      %p86 = por %p84, %p85
      %p87 = scmp.ne.s32.totalorder %s78, %s79
      %p88 = scmp.eq.s32.totalorder %s26, 0
      %p89 = por %p87, %p88
      %p90 = scmp.ne.s32.totalorder %s78, %s79
      %p91 = scmp.eq.s32.totalorder %s27, 2
      %p92 = por %p90, %p91
      %p94 = scmp.ne.s32.totalorder %s79, %s93
      %p95 = scmp.eq.s32.totalorder %s27, 0
      %p96 = por %p94, %p95
      %s98 = sadd.s32 %s97, 1
      %p101 = scmp.eq.s32.totalorder %s21, 2
      %p102 = scmp.ne.s32.totalorder %s97, %s99
      %p103 = scmp.eq.s32.totalorder %s21, 0
      %p104 = por %p102, %p103
      %p105 = scmp.ne.s32.totalorder %s97, %s99
      %p106 = scmp.eq.s32.totalorder %s26, 2
      %p107 = por %p105, %p106
      %p108 = scmp.ne.s32.totalorder %s99, %s100
      %p109 = scmp.eq.s32.totalorder %s26, 0
      %p110 = por %p108, %p109
      %p111 = scmp.ne.s32.totalorder %s99, %s100
      %p112 = scmp.eq.s32.totalorder %s27, 2
      %p113 = por %p111, %p112
      %p115 = scmp.ne.s32.totalorder %s100, %s114
      %p116 = scmp.eq.s32.totalorder %s27, 0
      %p117 = por %p115, %p116
      %s119 = sadd.s32 %s118, 1
      %p122 = scmp.eq.s32.totalorder %s21, 2
      %p123 = scmp.ne.s32.totalorder %s118, %s120
      %p124 = scmp.eq.s32.totalorder %s21, 0
      %p125 = por %p123, %p124
      %p126 = scmp.ne.s32.totalorder %s118, %s120
      %p127 = scmp.eq.s32.totalorder %s26, 2
      %p128 = por %p126, %p127
      %p129 = scmp.ne.s32.totalorder %s120, %s121
      %p130 = scmp.eq.s32.totalorder %s26, 0
      %p131 = por %p129, %p130
      %p132 = scmp.ne.s32.totalorder %s120, %s121
      %p133 = scmp.eq.s32.totalorder %s27, 2
      %p134 = por %p132, %p133
      %p136 = scmp.ne.s32.totalorder %s121, %s135
      %p137 = scmp.eq.s32.totalorder %s27, 0
      %p138 = por %p136, %p137
      %s140 = sadd.s32 %s139, 1
      %p143 = scmp.eq.s32.totalorder %s21, 2
      %p144 = scmp.ne.s32.totalorder %s139, %s141
      %p145 = scmp.eq.s32.totalorder %s21, 0
      %p146 = por %p144, %p145
      %p147 = scmp.ne.s32.totalorder %s139, %s141
      %p148 = scmp.eq.s32.totalorder %s26, 2
      %p149 = por %p147, %p148
      %p150 = scmp.ne.s32.totalorder %s141, %s142
      %p151 = scmp.eq.s32.totalorder %s26, 0
      %p152 = por %p150, %p151
      %p153 = scmp.ne.s32.totalorder %s141, %s142
      %p154 = scmp.eq.s32.totalorder %s27, 2
      %p155 = por %p153, %p154
      %p157 = scmp.ne.s32.totalorder %s142, %s156
      %p158 = scmp.eq.s32.totalorder %s27, 0
      %p159 = por %p157, %p158
      %s161 = sadd.s32 %s160, 1
      %p164 = scmp.eq.s32.totalorder %s21, 2
      %p165 = scmp.ne.s32.totalorder %s160, %s162
      %p166 = scmp.eq.s32.totalorder %s21, 0
      %p167 = por %p165, %p166
      %p168 = scmp.ne.s32.totalorder %s160, %s162
      %p169 = scmp.eq.s32.totalorder %s26, 2
      %p170 = por %p168, %p169
      %p171 = scmp.ne.s32.totalorder %s162, %s163
      %p172 = scmp.eq.s32.totalorder %s26, 0
      %p173 = por %p171, %p172
      %p174 = scmp.ne.s32.totalorder %s162, %s163
      %p175 = scmp.eq.s32.totalorder %s27, 2
      %p176 = por %p174, %p175
      %p178 = scmp.ne.s32.totalorder %s163, %s177
      %p179 = scmp.eq.s32.totalorder %s27, 0
      %p180 = por %p178, %p179
      %s181 = ssub.s32 %s21, %s28
      %p182 = scmp.eq.s32.totalorder %s181, 0
      %s184 = sadd.s32 %s183, 1
      %s185 = scalar_select %p182, %s183, %s184
      %p188 = pneg %p182
      %p189 = scmp.eq.s32.totalorder %s21, 2
      %p190 = por %p188, %p189
      %p191 = scmp.ne.s32.totalorder %s183, %s186
      %p192 = scmp.eq.s32.totalorder %s21, 0
      %p193 = por %p191, %p192
      %p194 = scmp.ne.s32.totalorder %s183, %s186
      %p195 = scmp.eq.s32.totalorder %s26, 2
      %p196 = por %p194, %p195
      %p197 = scmp.ne.s32.totalorder %s186, %s187
      %p198 = scmp.eq.s32.totalorder %s26, 0
      %p199 = por %p197, %p198
      %p200 = scmp.ne.s32.totalorder %s186, %s187
      %p201 = scmp.eq.s32.totalorder %s27, 2
      %p202 = por %p200, %p201
      %p204 = scmp.ne.s32.totalorder %s187, %s203
      %p205 = scmp.eq.s32.totalorder %s27, 0
      %p206 = por %p204, %p205
      %p207 = scmp.le.s32.totalorder 1, %s21
      %p208 = scmp.lt.s32.totalorder %s21, 4
      %p209 = pnand %p207, %p208
      %p210 = pneg %p209
      // Predicated region
      $region9: #{tpu_custom_call.1} parent=5 // pred_check
        _
      $region10: #{tpu_custom_call.1} parent=5 // pred_check_branch
        %212 = sbr.rel (%p209) target = $region12
      $region11: #{tpu_custom_call.1} parent=5 // pred_region
        %s213 = ssub.s32 %s21, 1
        // Predicated region
        $region13: #{tpu_custom_call.1} parent=11 // pred_check
          %p214 = pneg %p68
        $region14: #{tpu_custom_call.1} parent=11 // pred_check_branch
          %216 = sbr.rel (%p214) target = $region16
        $region15: #{tpu_custom_call.1} parent=11 // pred_region
          %s218 = ssub.s32 448, 448
          %219 = vsyncadd [#allocation6], %s218
          %s220 = sshll.u32 [#allocation5], 4
          %s221 = int_to_ptr.vmem [resolvable:$true] %s220
          %226 = dma.hbm_to_vmem [thread:$0]  %s1, 448, %s221, [#allocation6], 64, 64, 4
        $region16: #{tpu_custom_call.1} parent=11 // pred_fallthru
          _
        // Predicated region
        $region17: #{tpu_custom_call.1} parent=11 // pred_check
          %p227 = pneg %p89
        $region18: #{tpu_custom_call.1} parent=11 // pred_check_branch
          %229 = sbr.rel (%p227) target = $region20
        $region19: #{tpu_custom_call.1} parent=11 // pred_region
          _
        $region20: #{tpu_custom_call.1} parent=11 // pred_fallthru
          _
        // Predicated region
        $region21: #{tpu_custom_call.1} parent=11 // pred_check
          %p230 = pneg %p110
        $region22: #{tpu_custom_call.1} parent=11 // pred_check_branch
          %232 = sbr.rel (%p230) target = $region24
        $region23: #{tpu_custom_call.1} parent=11 // pred_region
          %s234 = ssub.s32 448, 448
          %235 = vsyncadd [#allocation6], %s234
          %s236 = sshll.u32 [#allocation7], 4
          %s237 = int_to_ptr.vmem [resolvable:$true] %s236
          %242 = dma.hbm_to_vmem [thread:$0]  %s3, 448, %s237, [#allocation6], 64, 64, 4
        $region24: #{tpu_custom_call.1} parent=11 // pred_fallthru
          _
        // Predicated region
        $region25: #{tpu_custom_call.1} parent=11 // pred_check
          %p243 = pneg %p131
        $region26: #{tpu_custom_call.1} parent=11 // pred_check_branch
          %245 = sbr.rel (%p243) target = $region28
        $region27: #{tpu_custom_call.1} parent=11 // pred_region
          _
        $region28: #{tpu_custom_call.1} parent=11 // pred_fallthru
          _
        // Predicated region
        $region29: #{tpu_custom_call.1} parent=11 // pred_check
          %p246 = pneg %p152
        $region30: #{tpu_custom_call.1} parent=11 // pred_check_branch
          %248 = sbr.rel (%p246) target = $region32
        $region31: #{tpu_custom_call.1} parent=11 // pred_region
          %s250 = ssub.s32 448, 448
          %251 = vsyncadd [#allocation9], %s250
          %s252 = sshll.u32 [#allocation8], 4
          %s253 = int_to_ptr.vmem [resolvable:$true] %s252
          %258 = dma.hbm_to_vmem [thread:$0]  %s5, 448, %s253, [#allocation9], 64, 64, 4
        $region32: #{tpu_custom_call.1} parent=11 // pred_fallthru
          _
        // Predicated region
        $region33: #{tpu_custom_call.1} parent=11 // pred_check
          %p259 = pneg %p173
        $region34: #{tpu_custom_call.1} parent=11 // pred_check_branch
          %261 = sbr.rel (%p259) target = $region36
        $region35: #{tpu_custom_call.1} parent=11 // pred_region
          _
        $region36: #{tpu_custom_call.1} parent=11 // pred_fallthru
          _
      $region12: #{tpu_custom_call.1} parent=5 // pred_fallthru
        _
      %p262 = scmp.lt.s32.totalorder %s21, 3
      // Predicated region
      $region37: #{tpu_custom_call.1} parent=5 // pred_check
        %p263 = pneg %p262
      $region38: #{tpu_custom_call.1} parent=5 // pred_check_branch
        %265 = sbr.rel (%p263) target = $region40
      $region39: #{tpu_custom_call.1} parent=5 // pred_region
        // Predicated region
        $region41: #{tpu_custom_call.1} parent=39 // pred_check
          %p266 = pneg %p41
        $region42: #{tpu_custom_call.1} parent=39 // pred_check_branch
          %268 = sbr.rel (%p266) target = $region44
        $region43: #{tpu_custom_call.1} parent=39 // pred_region
          %s269 = sand.u32 %s31, 1
          %s270 = scalar_lea.sflag [#allocation3], %s269
          %s271 = sand.u32 %s31, 1
          %s272 = smul.addr %s271, 8
          %s273 = scalar_lea.vmem [#allocation2], %s272
          %s274 = smul.u32 2, %s21
          %s276 = ssub.s32 128, 128
          %277 = vsyncadd %s270, %s276
          %s278 = smul.addr %s274, 64
          %s279 = scalar_lea.hbm %s0, %s278
          %s280 = sshll.u32 %s273, 4
          %s281 = int_to_ptr.vmem [resolvable:$true] %s280
          %286 = dma.hbm_to_vmem [thread:$0]  %s279, 128, %s281, %s270, 64, 64, 4
        $region44: #{tpu_custom_call.1} parent=39 // pred_fallthru
          _
      $region40: #{tpu_custom_call.1} parent=5 // pred_fallthru
        _
      %p287 = scmp.le.s32.totalorder 1, %s21
      %p288 = scmp.lt.s32.totalorder %s21, 4
      %p289 = pnand %p287, %p288
      %p290 = pneg %p289
      // Predicated region
      $region45: #{tpu_custom_call.1} parent=5 // pred_check
        _
      $region46: #{tpu_custom_call.1} parent=5 // pred_check_branch
        %292 = sbr.rel (%p289) target = $region48
      $region47: #{tpu_custom_call.1} parent=5 // pred_region
        %s293 = ssub.s32 %s21, 1
        %s294 = sand.u32 %s34, 1
        %s295 = scalar_lea.sflag [#allocation3], %s294
        %s296 = sand.u32 %s34, 1
        %s297 = smul.addr %s296, 8
        %s298 = scalar_lea.vmem [#allocation2], %s297
        // Predicated region
        $region49: #{tpu_custom_call.1} parent=47 // pred_check
          %p299 = pneg %p47
        $region50: #{tpu_custom_call.1} parent=47 // pred_check_branch
          %301 = sbr.rel (%p299) target = $region52
        $region51: #{tpu_custom_call.1} parent=47 // pred_region
          %302 = dma.done %s295, 128
        $region52: #{tpu_custom_call.1} parent=47 // pred_fallthru
          _
        // Predicated region
        $region53: #{tpu_custom_call.1} parent=47 // pred_check
          %p303 = pneg %p68
        $region54: #{tpu_custom_call.1} parent=47 // pred_check_branch
          %305 = sbr.rel (%p303) target = $region56
        $region55: #{tpu_custom_call.1} parent=47 // pred_region
          %306 = dma.done [#allocation6], 448
        $region56: #{tpu_custom_call.1} parent=47 // pred_fallthru
          _
        // Predicated region
        $region57: #{tpu_custom_call.1} parent=47 // pred_check
          %p307 = pneg %p110
        $region58: #{tpu_custom_call.1} parent=47 // pred_check_branch
          %309 = sbr.rel (%p307) target = $region60
        $region59: #{tpu_custom_call.1} parent=47 // pred_region
          %310 = dma.done [#allocation6], 448
        $region60: #{tpu_custom_call.1} parent=47 // pred_fallthru
          _
        // Predicated region
        $region61: #{tpu_custom_call.1} parent=47 // pred_check
          %p311 = pneg %p152
        $region62: #{tpu_custom_call.1} parent=47 // pred_check_branch
          %313 = sbr.rel (%p311) target = $region64
        $region63: #{tpu_custom_call.1} parent=47 // pred_region
          %314 = dma.done [#allocation9], 448
        $region64: #{tpu_custom_call.1} parent=47 // pred_fallthru
          _
        %s315 = sand.u32 %s34, 1
        %s316 = scalar_lea.sflag [#allocation3], %s315
        %s317 = sand.u32 %s34, 1
        %s318 = smul.addr %s317, 8
        %s319 = scalar_lea.vmem [#allocation2], %s318
        %p320 = pneg %p47
        %p321 = pneg %p44
        %p322 = pneg %p68
        %p323 = pneg %p65
        %p324 = pneg %p89
        %p325 = pneg %p86
        %p326 = pneg %p110
        %p327 = pneg %p107
        %p328 = pneg %p131
        %p329 = pneg %p128
        %p330 = pneg %p152
        %p331 = pneg %p149
        %p332 = pneg %p173
        %p333 = pneg %p170
        %p334 = pneg %p199
        %p335 = pneg %p196
        %s336 = sand.u32 %s186, 1
        %s337 = scalar_lea.sflag [#allocation4], %s336
        %s338 = sand.u32 %s186, 1
        %s339 = smul.addr %s338, 16
        %s340 = scalar_lea.vmem [#allocation10], %s339
        %s341 = smul.u32 2, %s26
        %s342 = smul.u32 2, %s26
        %v344 = vld [vmem:[%s298] sm:$0xf]
        %v345 = vld [vmem:[%s298 + $0x4] sm:$0xf]
        %v346 = vld [vmem:[#allocation5] sm:$0xf]
        %v347 = vld [vmem:[#allocation5 + $0x4] sm:$0xf]
        %v348 = vld [vmem:[#allocation5 + $0x8] sm:$0xf]
        %v349 = vld [vmem:[#allocation5 + $0xc] sm:$0xf]
        %v350 = vld [vmem:[#allocation5 + $0x10] sm:$0xf]
        %v351 = vld [vmem:[#allocation5 + $0x14] sm:$0xf]
        %v352 = vld [vmem:[#allocation5 + $0x18] sm:$0x1]
        %v353 = vld [vmem:[%s2] sm:$0x1]
        %v355 = vlaneseq
        %v356 = vshrl.u32 %v355, 7
        %v357 = vsub.s32 0, %v356
        %v358 = vrot.slane %v353, %v357
        %v362 = vunpack.c.l.b16 %v344
        %v363 = vunpack.c.l.b16 %v345
        %v364 = vpack.c.b16 %v363, %v362
        %v372 = vunpack.c.l.b16 %v346
        %v373 = vunpack.c.l.b16 %v347
        %v374 = vunpack.c.l.b16 %v348
        %v375 = vunpack.c.l.b16 %v349
        %v376 = vunpack.c.l.b16 %v350
        %v377 = vunpack.c.l.b16 %v351
        %v378 = vunpack.c.l.b16 %v352
        %v379 = vpack.c.b16 %v373, %v372
        %v380 = vpack.c.b16 %v375, %v374
        %v381 = vpack.c.b16 %v377, %v376
        %v382 = vpack.c.b16 %v378, %v378
        %vm386 = vcmask 408576
        %v388 = vsel %vm386, %v364, 0
        %vm390 = vcmask 1040384
        %v392 = vsel %vm390, %v382, 0
        %394 = vmatprep.subr.bf16.mxu0 0
        %395 = vmatpush1.bf16.msra.mxu0 %v379
        %396 = vmatprep.subr.bf16.mxu0 0
        %397 = vmatpush1.bf16.msra.mxu0 %v380
        %398 = vmatprep.subr.bf16.mxu0 0
        %399 = vmatpush1.bf16.msra.mxu0 %v381
        %400 = vmatprep.subr.bf16.mxu0 0
        %401 = vmatpush1.bf16.msra.mxu0 %v392
        %402 = vmatprep.subr.bf16.mxu0 0
        %403 = vmatpush1.bf16.msra.mxu0 0
        %404 = vmatprep.subr.bf16.mxu0 0
        %405 = vmatpush1.bf16.msra.mxu0 0
        %406 = vmatprep.subr.bf16.mxu0 0
        %407 = vmatpush1.bf16.msra.mxu0 0
        %408 = vmatprep.subr.bf16.mxu0 0
        %409 = vmatpush1.bf16.msra.mxu0 0
        %410 = vmatprep.subr.bf16.mxu0 0
        %411 = vmatpush1.bf16.msra.mxu0 0
        %412 = vmatprep.subr.bf16.mxu0 0
        %413 = vmatpush1.bf16.msra.mxu0 0
        %414 = vmatprep.subr.bf16.mxu0 0
        %415 = vmatpush1.bf16.msra.mxu0 0
        %416 = vmatprep.subr.bf16.mxu0 0
        %417 = vmatpush1.bf16.msra.mxu0 0
        %418 = vmatprep.subr.bf16.mxu0 0
        %419 = vmatpush1.bf16.msra.mxu0 0
        %420 = vmatprep.subr.bf16.mxu0 0
        %421 = vmatpush1.bf16.msra.mxu0 0
        %422 = vmatprep.subr.bf16.mxu0 0
        %423 = vmatpush1.bf16.msra.mxu0 0
        %424 = vmatprep.subr.bf16.mxu0 0
        %425 = vmatpush1.bf16.msra.mxu0 0
        %426 = vmatprep.mubr.bf16.mxu0 0
        %427 = vmatmul.mubr.bf16.gmra.mrb[0].mxu0 %v388
        %v428 = vpop.f32.mrb[0].mxu0
        %v429 = vadd.f32 %v358, %v428
        %v430 = vpop.f32.mrb[0].mxu0
        %v431 = vpop.f32.mrb[0].mxu0
        %v432 = vadd.f32 %v358, %v431
        %v433 = vpop.f32.mrb[0].mxu0
        %434 = vdwg.mxu0
        %v435 = vmax.f32 %v429, 0.0
        %v436 = vmax.f32 %v432, 0.0
        %v437 = vpack.c.bf16 %v436, %v435
        %v438 = vld [vmem:[#allocation7] sm:$0xf]
        %v439 = vld [vmem:[#allocation7 + $0x4] sm:$0xf]
        %v440 = vld [vmem:[#allocation7 + $0x8] sm:$0xf]
        %v441 = vld [vmem:[#allocation7 + $0xc] sm:$0xf]
        %v442 = vld [vmem:[#allocation7 + $0x10] sm:$0xf]
        %v443 = vld [vmem:[#allocation7 + $0x14] sm:$0xf]
        %v444 = vld [vmem:[#allocation7 + $0x18] sm:$0x1]
        %v445 = vld [vmem:[%s4] sm:$0x1]
        %v447 = vlaneseq
        %v448 = vshrl.u32 %v447, 7
        %v449 = vsub.s32 0, %v448
        %v450 = vrot.slane %v445, %v449
        %v459 = vunpack.c.l.b16 %v438
        %v460 = vunpack.c.l.b16 %v439
        %v461 = vunpack.c.l.b16 %v440
        %v462 = vunpack.c.l.b16 %v441
        %v463 = vunpack.c.l.b16 %v442
        %v464 = vunpack.c.l.b16 %v443
        %v465 = vunpack.c.l.b16 %v444
        %v466 = vpack.c.b16 %v460, %v459
        %v467 = vpack.c.b16 %v462, %v461
        %v468 = vpack.c.b16 %v464, %v463
        %v469 = vpack.c.b16 %v465, %v465
        %v474 = vsel %vm386, %v437, 0
        %v477 = vsel %vm390, %v469, 0
        %479 = vmatprep.subr.bf16.mxu0 0
        %480 = vmatpush1.bf16.msra.mxu0 %v466
        %481 = vmatprep.subr.bf16.mxu0 0
        %482 = vmatpush1.bf16.msra.mxu0 %v467
        %483 = vmatprep.subr.bf16.mxu0 0
        %484 = vmatpush1.bf16.msra.mxu0 %v468
        %485 = vmatprep.subr.bf16.mxu0 0
        %486 = vmatpush1.bf16.msra.mxu0 %v477
        %487 = vmatprep.subr.bf16.mxu0 0
        %488 = vmatpush1.bf16.msra.mxu0 0
        %489 = vmatprep.subr.bf16.mxu0 0
        %490 = vmatpush1.bf16.msra.mxu0 0
        %491 = vmatprep.subr.bf16.mxu0 0
        %492 = vmatpush1.bf16.msra.mxu0 0
        %493 = vmatprep.subr.bf16.mxu0 0
        %494 = vmatpush1.bf16.msra.mxu0 0
        %495 = vmatprep.subr.bf16.mxu0 0
        %496 = vmatpush1.bf16.msra.mxu0 0
        %497 = vmatprep.subr.bf16.mxu0 0
        %498 = vmatpush1.bf16.msra.mxu0 0
        %499 = vmatprep.subr.bf16.mxu0 0
        %500 = vmatpush1.bf16.msra.mxu0 0
        %501 = vmatprep.subr.bf16.mxu0 0
        %502 = vmatpush1.bf16.msra.mxu0 0
        %503 = vmatprep.subr.bf16.mxu0 0
        %504 = vmatpush1.bf16.msra.mxu0 0
        %505 = vmatprep.subr.bf16.mxu0 0
        %506 = vmatpush1.bf16.msra.mxu0 0
        %507 = vmatprep.subr.bf16.mxu0 0
        %508 = vmatpush1.bf16.msra.mxu0 0
        %509 = vmatprep.subr.bf16.mxu0 0
        %510 = vmatpush1.bf16.msra.mxu0 0
        %511 = vmatprep.mubr.bf16.mxu0 0
        %512 = vmatmul.mubr.bf16.gmra.mrb[0].mxu0 %v474
        %v513 = vpop.f32.mrb[0].mxu0
        %v514 = vadd.f32 %v450, %v513
        %v515 = vpop.f32.mrb[0].mxu0
        %v516 = vpop.f32.mrb[0].mxu0
        %v517 = vadd.f32 %v450, %v516
        %v518 = vpop.f32.mrb[0].mxu0
        %519 = vdwg.mxu0
        %v520 = vmax.f32 %v514, 0.0
        %v521 = vmax.f32 %v517, 0.0
        %v522 = vpack.c.bf16 %v521, %v520
        %v523 = vld [vmem:[#allocation8] sm:$0xf]
        %v524 = vld [vmem:[#allocation8 + $0x4] sm:$0xf]
        %v525 = vld [vmem:[#allocation8 + $0x8] sm:$0xf]
        %v526 = vld [vmem:[#allocation8 + $0xc] sm:$0xf]
        %v527 = vld [vmem:[#allocation8 + $0x10] sm:$0xf]
        %v528 = vld [vmem:[#allocation8 + $0x14] sm:$0xf]
        %v529 = vld [vmem:[#allocation8 + $0x18] sm:$0x1]
        %v530 = vld [vmem:[%s6] sm:$0x1]
        %v532 = vlaneseq
        %v533 = vshrl.u32 %v532, 7
        %v534 = vsub.s32 0, %v533
        %v535 = vrot.slane %v530, %v534
        %v544 = vunpack.c.l.b16 %v523
        %v545 = vunpack.c.l.b16 %v524
        %v546 = vunpack.c.l.b16 %v525
        %v547 = vunpack.c.l.b16 %v526
        %v548 = vunpack.c.l.b16 %v527
        %v549 = vunpack.c.l.b16 %v528
        %v550 = vunpack.c.l.b16 %v529
        %v551 = vpack.c.b16 %v545, %v544
        %v552 = vpack.c.b16 %v547, %v546
        %v553 = vpack.c.b16 %v549, %v548
        %v554 = vpack.c.b16 %v550, %v550
        %v559 = vsel %vm386, %v522, 0
        %v562 = vsel %vm390, %v554, 0
        %564 = vmatprep.subr.bf16.mxu0 0
        %565 = vmatpush1.bf16.msra.mxu0 %v551
        %566 = vmatprep.subr.bf16.mxu0 0
        %567 = vmatpush1.bf16.msra.mxu0 %v552
        %568 = vmatprep.subr.bf16.mxu0 0
        %569 = vmatpush1.bf16.msra.mxu0 %v553
        %570 = vmatprep.subr.bf16.mxu0 0
        %571 = vmatpush1.bf16.msra.mxu0 %v562
        %572 = vmatprep.subr.bf16.mxu0 0
        %573 = vmatpush1.bf16.msra.mxu0 0
        %574 = vmatprep.subr.bf16.mxu0 0
        %575 = vmatpush1.bf16.msra.mxu0 0
        %576 = vmatprep.subr.bf16.mxu0 0
        %577 = vmatpush1.bf16.msra.mxu0 0
        %578 = vmatprep.subr.bf16.mxu0 0
        %579 = vmatpush1.bf16.msra.mxu0 0
        %580 = vmatprep.subr.bf16.mxu0 0
        %581 = vmatpush1.bf16.msra.mxu0 0
        %582 = vmatprep.subr.bf16.mxu0 0
        %583 = vmatpush1.bf16.msra.mxu0 0
        %584 = vmatprep.subr.bf16.mxu0 0
        %585 = vmatpush1.bf16.msra.mxu0 0
        %586 = vmatprep.subr.bf16.mxu0 0
        %587 = vmatpush1.bf16.msra.mxu0 0
        %588 = vmatprep.subr.bf16.mxu0 0
        %589 = vmatpush1.bf16.msra.mxu0 0
        %590 = vmatprep.subr.bf16.mxu0 0
        %591 = vmatpush1.bf16.msra.mxu0 0
        %592 = vmatprep.subr.bf16.mxu0 0
        %593 = vmatpush1.bf16.msra.mxu0 0
        %594 = vmatprep.subr.bf16.mxu0 0
        %595 = vmatpush1.bf16.msra.mxu0 0
        %596 = vmatprep.mubr.bf16.mxu0 0
        %597 = vmatmul.mubr.bf16.gmra.mrb[0].mxu0 %v559
        %v598 = vpop.f32.mrb[0].mxu0
        %v599 = vadd.f32 %v535, %v598
        %v600 = vpop.f32.mrb[0].mxu0
        %v601 = vpop.f32.mrb[0].mxu0
        %v602 = vadd.f32 %v535, %v601
        %v603 = vpop.f32.mrb[0].mxu0
        %604 = vdwg.mxu0
        %vm605 = vcmask 523264
        %606 = vst.msk [vmem:[%s340] sm:$0xff] %vm605, %v599
        %607 = vst.msk [vmem:[%s340 + $0x8] sm:$0xff] %vm605, %v602
        %s608 = sand.u32 %s186, 1
        %s609 = scalar_lea.sflag [#allocation4], %s608
        %s610 = sand.u32 %s186, 1
        %s611 = smul.addr %s610, 16
        %s612 = scalar_lea.vmem [#allocation10], %s611
        // Predicated region
        $region65: #{tpu_custom_call.1} parent=47 // pred_check
          %p613 = pneg %p196
        $region66: #{tpu_custom_call.1} parent=47 // pred_check_branch
          %615 = sbr.rel (%p613) target = $region68
        $region67: #{tpu_custom_call.1} parent=47 // pred_region
          %s616 = smul.u32 2, %s26
          %s618 = ssub.s32 256, 256
          %619 = vsyncadd %s609, %s618
          %s620 = smul.addr %s616, 128
          %s621 = scalar_lea.hbm %s7, %s620
          %s622 = sshll.u32 %s612, 4
          %s623 = int_to_ptr.vmem [resolvable:$true] %s622
          %628 = dma.vmem_to_hbm [thread:$0]  %s623, 256, %s621, %s609, 128, 128, 8
        $region68: #{tpu_custom_call.1} parent=47 // pred_fallthru
          _
      $region48: #{tpu_custom_call.1} parent=5 // pred_fallthru
        _
      %p629 = scmp.le.s32.totalorder 2, %s21
      // Predicated region
      $region69: #{tpu_custom_call.1} parent=5 // pred_check
        %p630 = pneg %p629
      $region70: #{tpu_custom_call.1} parent=5 // pred_check_branch
        %632 = sbr.rel (%p630) target = $region72
      $region71: #{tpu_custom_call.1} parent=5 // pred_region
        %s633 = ssub.s32 %s21, 2
        // Predicated region
        $region73: #{tpu_custom_call.1} parent=71 // pred_check
          %p634 = pneg %p202
        $region74: #{tpu_custom_call.1} parent=71 // pred_check_branch
          %636 = sbr.rel (%p634) target = $region76
        $region75: #{tpu_custom_call.1} parent=71 // pred_region
          %s637 = sand.u32 %s187, 1
          %s638 = scalar_lea.sflag [#allocation4], %s637
          %s639 = sand.u32 %s187, 1
          %s640 = smul.addr %s639, 16
          %s641 = scalar_lea.vmem [#allocation10], %s640
          %642 = dma.done %s638, 256
        $region76: #{tpu_custom_call.1} parent=71 // pred_fallthru
          _
      $region72: #{tpu_custom_call.1} parent=5 // pred_fallthru
        _
    $region6: #{tpu_custom_call.1} parent=1 // loop_footer
      %s25 = sadd.s32 1, %s21
    $region7: #{tpu_custom_call.1} parent=1 // loop_footer_branch
      %20 = sbr.rel target = $region3
    $region8: #{tpu_custom_call.1} parent=1 // loop_exit
      _
    %643 = vsyncpa [#allocation3], 1
    %s644 = scalar_lea.sflag [#allocation3], 1
    %645 = vsyncpa %s644, 1
    %646 = vsyncpa [#allocation6], 1
    %647 = vsyncpa [#allocation9], 1
    %648 = vsyncpa [#allocation4], 1
    %s649 = scalar_lea.sflag [#allocation4], 1
    %650 = vsyncpa %s649, 1

</llo_original>
